<compile_context>
chip_gen: v7x
topology: tpu7x:2x2x1
jax: 0.10.0
libtpu: 0.0.40
codegen_flags: <defaults>
</compile_context>

<pallas_src>
import jax
import jax.numpy as jnp
from jax.experimental import pallas as pl
from jax.experimental.pallas import tpu as pltpu

_LANES = 128


def _rand_kernel(seed_ref, out_ref):
    """Fill out_ref (f32[tile_rows, 128]) with uniform [0, 1) values.

    seed_ref: SMEM int32[1] -- base seed.
    Randoms are a pure function of (seed, global element index), so the result
    is independent of the tiling / grid decomposition.
    """
    tile_rows, lanes = out_ref.shape
    row = jax.lax.broadcasted_iota(jnp.int32, (tile_rows, lanes), 0)
    lane = jax.lax.broadcasted_iota(jnp.int32, (tile_rows, lanes), 1)
    base_row = pl.program_id(0) * tile_rows
    idx = (base_row + row) * lanes + lane  # global linear element index

    # Counter-based hash: murmur3 finalizer seeded with seed * golden-ratio.
    # (Constants written as wrapped int32 literals: 0x9E3779B9, 0x85EBCA6B,
    #  0xC2B2AE35.)
    h = idx + seed_ref[0] * jnp.int32(-1640531527)
    h = h ^ jax.lax.shift_right_logical(h, 16)
    h = h * jnp.int32(-2048144789)
    h = h ^ jax.lax.shift_right_logical(h, 13)
    h = h * jnp.int32(-1028477387)
    h = h ^ jax.lax.shift_right_logical(h, 16)

    # bits -> uniform [0,1): random 23-bit mantissa with exponent of 1.0,
    # bitcast to f32 (value in [1,2)), subtract 1.  No int->float convert.
    mant = jax.lax.shift_right_logical(h, 9)
    fbits = mant | jnp.int32(0x3F800000)
    out_ref[...] = jax.lax.bitcast_convert_type(fbits, jnp.float32) - jnp.float32(1.0)


def dummy_residue_forward(x, seed, num_classes=2):
    """Pallas equivalent of DummyResidueModel.forward.

    x    : (N, F) node feature matrix (only N = x.shape[0] is used).
    seed : int32 array of shape (1,).
    returns: (N, predicted_classes) float32, uniform in [0, 1).
    """
    n = x.shape[0]
    predicted_classes = num_classes if num_classes > 2 else 1
    total = n * predicted_classes

    # Flatten logical output to a lane-dense (rows, 128) f32 slab.
    rows = pl.cdiv(total, _LANES)
    rows = max(8, ((rows + 7) // 8) * 8)          # sublane (8) alignment

    # Row tile: 8..1024 rows (<= 512 KiB f32 per buffer -> safe on v7x VMEM),
    # sublane-aligned; pad rows up to a multiple of the tile.
    tile_rows = min(rows, 1024)
    rows_padded = ((rows + tile_rows - 1) // tile_rows) * tile_rows
    grid = (rows_padded // tile_rows,)

    out_padded = pl.pallas_call(
        _rand_kernel,
        out_shape=jax.ShapeDtypeStruct((rows_padded, _LANES), jnp.float32),
        grid=grid,
        in_specs=[pl.BlockSpec(memory_space=pltpu.SMEM)],
        out_specs=pl.BlockSpec((tile_rows, _LANES), lambda i: (i, 0)),
        compiler_params=pltpu.CompilerParams(dimension_semantics=("parallel",)),
    )(seed)

    flat = out_padded.reshape(-1)[:total]         # contiguous slice of the slab
    return flat.reshape(n, predicted_classes)


if __name__ == "__main__":
    key = jax.random.PRNGKey(0)
    kx, kseed = jax.random.split(key)

    # Small graph: 8 nodes ("residues") with 16-dim features.
    x = jax.random.normal(kx, (8, 16), dtype=jnp.float32)
    seed = jax.random.randint(kseed, (1,), 0, 2**31 - 1, dtype=jnp.int32)

    # Binary case: predicted_classes = 1.
    out = dummy_residue_forward(x, seed, num_classes=2)
    out = jax.block_until_ready(out)
    assert out.shape == (x.shape[0], 1), out.shape
    assert out.dtype == jnp.float32, out.dtype
    assert bool(jnp.all(out >= 0.0)) and bool(jnp.all(out < 1.0))

    # Multi-class case: predicted_classes = num_classes.
    out3 = dummy_residue_forward(x, seed, num_classes=3)
    out3 = jax.block_until_ready(out3)
    assert out3.shape == (x.shape[0], 3), out3.shape
    assert bool(jnp.all(out3 >= 0.0)) and bool(jnp.all(out3 < 1.0))

    print("KERNEL_OK")
</pallas_src>

<mosaic_0001>
module attributes {stable_mosaic.version = 11 : i64} {
  func.func @_rand_kernel(%arg0: i32, %arg1: memref<1xi32, #tpu.memory_space<smem>>, %arg2: memref<8x128xf32, #tpu.memory_space<vmem>>) attributes {dimension_semantics = [#tpu.dimension_semantics<parallel>], iteration_bounds = array<i64: 1>, scalar_prefetch = 0 : i64, scratch_operands = 0 : i64, tpu.core_type = #tpu.core_type<tc>, window_params = [{transform_indices = @transform_0, window_bounds = array<i64: 1>}, {transform_indices = @transform_1, window_bounds = array<i64: 8, 128>}]} {
    %0 = tpu.iota {dimensions = array<i32: 0>} : vector<8x128xi32>
    %1 = tpu.iota {dimensions = array<i32: 1>} : vector<8x128xi32>
    %c8_i32 = arith.constant 8 : i32
    %2 = arith.muli %arg0, %c8_i32 : i32
    %3 = vector.broadcast %2 : i32 to vector<8x128xi32>
    %4 = arith.addi %3, %0 : vector<8x128xi32>
    %c128_i32 = arith.constant 128 : i32
    %5 = vector.broadcast %c128_i32 : i32 to vector<8x128xi32>
    %6 = arith.muli %4, %5 : vector<8x128xi32>
    %7 = arith.addi %6, %1 : vector<8x128xi32>
    %c0 = arith.constant 0 : index
    %8 = memref.load %arg1[%c0] : memref<1xi32, #tpu.memory_space<smem>>
    %c-1640531527_i32 = arith.constant -1640531527 : i32
    %9 = arith.muli %8, %c-1640531527_i32 : i32
    %10 = vector.broadcast %9 : i32 to vector<8x128xi32>
    %11 = arith.addi %7, %10 : vector<8x128xi32>
    %c16_i32 = arith.constant 16 : i32
    %12 = vector.broadcast %c16_i32 : i32 to vector<8x128xi32>
    %13 = arith.shrui %11, %12 : vector<8x128xi32>
    %14 = arith.xori %11, %13 : vector<8x128xi32>
    %c-2048144789_i32 = arith.constant -2048144789 : i32
    %15 = vector.broadcast %c-2048144789_i32 : i32 to vector<8x128xi32>
    %16 = arith.muli %14, %15 : vector<8x128xi32>
    %c13_i32 = arith.constant 13 : i32
    %17 = vector.broadcast %c13_i32 : i32 to vector<8x128xi32>
    %18 = arith.shrui %16, %17 : vector<8x128xi32>
    %19 = arith.xori %16, %18 : vector<8x128xi32>
    %c-1028477387_i32 = arith.constant -1028477387 : i32
    %20 = vector.broadcast %c-1028477387_i32 : i32 to vector<8x128xi32>
    %21 = arith.muli %19, %20 : vector<8x128xi32>
    %c16_i32_0 = arith.constant 16 : i32
    %22 = vector.broadcast %c16_i32_0 : i32 to vector<8x128xi32>
    %23 = arith.shrui %21, %22 : vector<8x128xi32>
    %24 = arith.xori %21, %23 : vector<8x128xi32>
    %c9_i32 = arith.constant 9 : i32
    %25 = vector.broadcast %c9_i32 : i32 to vector<8x128xi32>
    %26 = arith.shrui %24, %25 : vector<8x128xi32>
    %c1065353216_i32 = arith.constant 1065353216 : i32
    %27 = vector.broadcast %c1065353216_i32 : i32 to vector<8x128xi32>
    %28 = arith.ori %26, %27 : vector<8x128xi32>
    %29 = tpu.bitcast %28 : vector<8x128xi32> -> vector<8x128xf32>
    %cst = arith.constant 1.000000e+00 : f32
    %30 = vector.broadcast %cst : f32 to vector<8x128xf32>
    %31 = arith.subf %29, %30 : vector<8x128xf32>
    %c0_1 = arith.constant 0 : index
    %c0_2 = arith.constant 0 : index
    %32 = vector.load %arg2[%c0_1, %c0_2] : memref<8x128xf32, #tpu.memory_space<vmem>>, vector<8x128xf32>
    tpu.vector_store %arg2[%c0_1, %c0_2], %31 {strides = array<i32>} : memref<8x128xf32, #tpu.memory_space<vmem>>, vector<8x128xf32>,
    return
  }
  func.func @transform_0(%arg0: i32) -> i32 {
    %c0_i32 = arith.constant 0 : i32
    %c0_i32_0 = arith.constant 0 : i32
    return %c0_i32 : i32
  }
  func.func @transform_1(%arg0: i32) -> (i32, i32) {
    %c0_i32 = arith.constant 0 : i32
    %c0_i32_0 = arith.constant 0 : i32
    return %arg0, %c0_i32 : i32, i32
  }
}

</mosaic_0001>

<llo_original>
// kernel: tpu_custom_call.1
$region0: #{tpu_custom_call.1}
  #allocation0 [shape = 'u32[]', space=smem, size = 0x4, offset = 0x4, fixed_abs, tag = 'smem constant byte address 0x4 - core index']
  #allocation1 [shape = 'u32[144,128]{1,0:T(1,128)}', space=vmem, size = 0x12000, scoped, tag = 'internal scratch']
  #allocation2 [shape = 's32[1]{0:T(128)S(6)}', space=smem, size = 0x200, scoped, tag = 'scoped memory for tpu_custom_call.1']
  %s0 = inlined_call_operand.<no memory space> [shape: s32[1], index: 0, kind: input, shape index: {}]
  %s1 = inlined_call_operand.hbm [shape: f32[8,128], index: 1, kind: output, shape index: {}]
  %s2 = sld [smem:[#allocation0]]
  $region14: #{tpu_custom_call.1} parent=0
    _
  %s4 = ssub.s32 1, %s2
  %s5 = scalar_select 0, %s4, %s2
  %6 = sst [smem:[#allocation2]] %s0
  $region1: #{tpu_custom_call.1} parent=0
    #allocation3 [shape = 'u8[4096]{0}', space=vmem, size = 0x1000, scoped, tag = 'output window, operand 0, single buffered']
    #allocation4 [shape = 's32[1]{0}', space=sflag, size = 0x4, scoped, tag = 'scoped memory for tpu_custom_call.1']
    %7 = vsyncpa [#allocation4], 0
    // Predicated region
    $region2: #{tpu_custom_call.1} parent=1 // pred_check
      _
    $region3: #{tpu_custom_call.1} parent=1 // pred_check_branch
      %9 = sbr.rel (0) target = $region5
    $region4: #{tpu_custom_call.1} parent=1 // pred_region
      _
    $region5: #{tpu_custom_call.1} parent=1 // pred_fallthru
      _
    %v10 = vlaneseq
    %v11 = vshrl.u32 %v10, 7
    %v12 = vlaneseq
    %v13 = vand.u32 %v12, 127
    %s14 = smul.u32 0, 8
    %v15 = vstv %s14
    %v16 = vadd.s32 %v15, %v11
    %v17 = vmul.u32 %v16, 128
    %v18 = vadd.s32 %v17, %v13
    %s19 = sld [smem:[#allocation2]]
    %s20 = smul.u32 %s19, 2654435769
    %v21 = vstv %s20
    %v22 = vadd.s32 %v18, %v21
    %v23 = vshrl.u32 %v22, 16
    %v24 = vxor.u32 %v22, %v23
    %v25 = vmul.u32 %v24, 2246822507
    %v26 = vshrl.u32 %v25, 13
    %v27 = vxor.u32 %v25, %v26
    %v28 = vmul.u32 %v27, 3266489909
    %v29 = vshrl.u32 %v28, 16
    %v30 = vxor.u32 %v28, %v29
    %v31 = vshrl.u32 %v30, 9
    %v32 = vor.u32 %v31, 1065353216
    %v34 = vsub.f32 %v32, 1.0
    %35 = vst [vmem:[#allocation3] sm:$0xff] %v34
    // Predicated region
    $region6: #{tpu_custom_call.1} parent=1 // pred_check
      _
    $region7: #{tpu_custom_call.1} parent=1 // pred_check_branch
      %37 = sbr.rel (0) target = $region9
    $region8: #{tpu_custom_call.1} parent=1 // pred_region
      %s39 = ssub.s32 128, 128
      %40 = vsyncadd [#allocation4], %s39
      %s42 = sshll.u32 [#allocation3], 4
      %s43 = int_to_ptr.vmem [resolvable:$true] %s42
      %45 = dma.vmem_to_hbm [thread:$0]  %s43, 128, %s1, [#allocation4]
    $region9: #{tpu_custom_call.1} parent=1 // pred_fallthru
      _
    // Predicated region
    $region10: #{tpu_custom_call.1} parent=1 // pred_check
      _
    $region11: #{tpu_custom_call.1} parent=1 // pred_check_branch
      %47 = sbr.rel (0) target = $region13
    $region12: #{tpu_custom_call.1} parent=1 // pred_region
      %48 = dma.done [#allocation4], 128
    $region13: #{tpu_custom_call.1} parent=1 // pred_fallthru
      _
    %49 = vsyncpa [#allocation4], 1

</llo_original>
